<compile_context>
chip_gen: v7x
topology: tpu7x:2x2x1
jax: 0.10.0
libtpu: 0.0.40
codegen_flags: <defaults>
</compile_context>

<pallas_src>
import functools

import jax
import jax.numpy as jnp
from jax.experimental import pallas as pl
from jax.experimental.pallas import tpu as pltpu


def _ce_label_smooth_kernel(logits_ref, targets_ref, out_ref, *,
                            num_classes, epsilon, true_batch, tile_b):
    i = pl.program_id(0)
    x = logits_ref[...].astype(jnp.float32)                     # (TB, C)
    TB, C = x.shape

    # Mask rows past the true batch size (partial last tile) so padded/garbage
    # rows never reach the reduction.
    row_ids = jax.lax.broadcasted_iota(jnp.int32, (TB, 1), 0) + i * tile_b
    row_mask = row_ids < true_batch                              # (TB, 1)
    x = jnp.where(row_mask, x, 0.0)

    # Row-wise pieces of log-softmax (no (TB, C) log_probs materialized).
    m = jnp.max(x, axis=-1, keepdims=True)                       # (TB, 1)
    lse = jnp.log(jnp.sum(jnp.exp(x - m), axis=-1, keepdims=True))
    sum_x = jnp.sum(x, axis=-1, keepdims=True)                   # (TB, 1)

    # x at the target class via iota-compare (one-hot never materialized
    # as a separate smoothed tensor).
    cls_ids = jax.lax.broadcasted_iota(jnp.int32, (TB, C), 1)
    tgt = targets_ref[...]                                       # (TB, 1) int32
    x_at_t = jnp.sum(jnp.where(cls_ids == tgt, x, 0.0),
                     axis=-1, keepdims=True)                     # (TB, 1)

    mlse = m + lse
    loss_rows = -((1.0 - epsilon) * (x_at_t - mlse)
                  + (epsilon / num_classes) * (sum_x - num_classes * mlse))
    loss_rows = jnp.where(row_mask, loss_rows, 0.0)

    # Per-tile partial loss -> SMEM scalar output block.
    out_ref[0, 0] = jnp.sum(loss_rows)


def cross_entropy_label_smooth(logits, targets, num_classes, epsilon=0.1,
                               tile_b=None):
    """logits: (B, num_classes) float; targets: (B,) int class indices.

    Returns the scalar smoothed cross-entropy loss (mean over batch, sum over
    classes), matching the PyTorch CrossEntropyLabelSmooth forward.
    """
    B, C = logits.shape
    assert C == num_classes
    targets_2d = targets.astype(jnp.int32).reshape(B, 1)

    # Auto-size the batch tile: largest multiple of 8 whose f32 logits block
    # stays under ~8 MiB per buffer (x2 double buffer = 16 MiB live), capped
    # at 1024 rows. Safe on v5e/v6e (128 MiB) and v7x (64 MiB) VMEM.
    if tile_b is None:
        per_buffer_budget = 8 * 1024 * 1024
        rows = max(8, per_buffer_budget // (C * 4))
        tile_b = int(min((rows // 8) * 8, 1024))
    if tile_b >= B:
        tile_b = B                       # single block == full array (any B ok)
    else:
        tile_b = max(8, (tile_b // 8) * 8)  # keep (8,128) sublane alignment
    num_tiles = pl.cdiv(B, tile_b)

    kernel = functools.partial(
        _ce_label_smooth_kernel,
        num_classes=num_classes, epsilon=float(epsilon),
        true_batch=B, tile_b=tile_b)

    cost = pl.CostEstimate(
        flops=int(6 * B * C),
        transcendentals=int(B * C + B),
        bytes_accessed=int(B * C * logits.dtype.itemsize + B * 4 + num_tiles * 4),
    )

    partials = pl.pallas_call(
        kernel,
        out_shape=jax.ShapeDtypeStruct((num_tiles, 1), jnp.float32),
        grid_spec=pltpu.PrefetchScalarGridSpec(
            num_scalar_prefetch=0,
            grid=(num_tiles,),
            in_specs=[
                pl.BlockSpec((tile_b, C), lambda i: (i, 0)),
                pl.BlockSpec((tile_b, 1), lambda i: (i, 0)),
            ],
            out_specs=pl.BlockSpec(
                (1, 1), lambda i: (i, 0), memory_space=pltpu.SMEM),
        ),
        compiler_params=pltpu.CompilerParams(
            dimension_semantics=("parallel",),
            vmem_limit_bytes=32 * 1024 * 1024,
        ),
        cost_estimate=cost,
    )(logits, targets_2d)

    # Tiny reduction over per-tile partials + mean over the *true* batch size.
    return jnp.sum(partials) / B


def _reference(logits, targets, num_classes, epsilon=0.1):
    log_probs = jax.nn.log_softmax(logits.astype(jnp.float32), axis=1)
    onehot = jax.nn.one_hot(targets, num_classes, dtype=jnp.float32)
    smoothed = (1.0 - epsilon) * onehot + epsilon / num_classes
    return jnp.sum(jnp.mean(-smoothed * log_probs, axis=0))


if __name__ == "__main__":
    num_classes = 32
    batch = 8
    epsilon = 0.1

    key = jax.random.PRNGKey(0)
    k1, k2 = jax.random.split(key)
    logits = jax.random.normal(k1, (batch, num_classes), dtype=jnp.float32)
    targets = jax.random.randint(k2, (batch,), 0, num_classes, dtype=jnp.int32)

    loss = cross_entropy_label_smooth(logits, targets, num_classes, epsilon)
    loss = jax.block_until_ready(loss)

    ref = _reference(logits, targets, num_classes, epsilon)
    assert jnp.allclose(loss, ref, atol=1e-5, rtol=1e-5), (loss, ref)

    # Also exercise a multi-tile / non-divisible batch path (small tile forced).
    batch2 = 20
    k3, k4 = jax.random.split(k2)
    logits2 = jax.random.normal(k3, (batch2, num_classes), dtype=jnp.float32)
    targets2 = jax.random.randint(k4, (batch2,), 0, num_classes, dtype=jnp.int32)
    loss2 = cross_entropy_label_smooth(logits2, targets2, num_classes, epsilon,
                                       tile_b=8)
    loss2 = jax.block_until_ready(loss2)
    ref2 = _reference(logits2, targets2, num_classes, epsilon)
    assert jnp.allclose(loss2, ref2, atol=1e-5, rtol=1e-5), (loss2, ref2)

    print("KERNEL_OK")
</pallas_src>

<mosaic_0001>
module attributes {stable_mosaic.version = 11 : i64} {
  func.func @_ce_label_smooth_kernel(%arg0: i32, %arg1: memref<8x32xf32, #tpu.memory_space<vmem>>, %arg2: memref<8x1xi32, #tpu.memory_space<vmem>>, %arg3: memref<1x1xf32, #tpu.memory_space<smem>>) attributes {dimension_semantics = [#tpu.dimension_semantics<parallel>], iteration_bounds = array<i64: 1>, scalar_prefetch = 0 : i64, scratch_operands = 0 : i64, tpu.core_type = #tpu.core_type<tc>, window_params = [{transform_indices = @transform_0, window_bounds = array<i64: 8, 32>}, {transform_indices = @transform_1, window_bounds = array<i64: 8, 1>}, {transform_indices = @transform_2, window_bounds = array<i64: 1, 1>}]} {
    %c0 = arith.constant 0 : index
    %c0_0 = arith.constant 0 : index
    %0 = vector.load %arg1[%c0, %c0_0] : memref<8x32xf32, #tpu.memory_space<vmem>>, vector<8x32xf32>
    %1 = tpu.iota {dimensions = array<i32: 0>} : vector<8x1xi32>
    %c8_i32 = arith.constant 8 : i32
    %2 = arith.muli %arg0, %c8_i32 : i32
    %3 = vector.broadcast %2 : i32 to vector<8x1xi32>
    %4 = arith.addi %1, %3 : vector<8x1xi32>
    %c8_i32_1 = arith.constant 8 : i32
    %5 = vector.broadcast %c8_i32_1 : i32 to vector<8x1xi32>
    %6 = arith.cmpi slt, %4, %5 : vector<8x1xi32>
    %cst = arith.constant 0.000000e+00 : f32
    %7 = vector.shape_cast %6 : vector<8x1xi1> to vector<8x1xi1>
    %8 = vector.broadcast %7 : vector<8x1xi1> to vector<8x32xi1>
    %9 = vector.broadcast %cst : f32 to vector<8x32xf32>
    %10 = arith.select %8, %0, %9 : vector<8x32xi1>, vector<8x32xf32>
    %cst_2 = arith.constant dense<0xFF800000> : vector<8xf32>
    %11 = vector.multi_reduction <maximumf>, %10, %cst_2 [1] : vector<8x32xf32> to vector<8xf32>
    %12 = vector.shape_cast %11 : vector<8xf32> to vector<8x1xf32>
    %13 = vector.broadcast %12 : vector<8x1xf32> to vector<8x32xf32>
    %14 = arith.subf %10, %13 : vector<8x32xf32>
    %15 = math.exp %14 : vector<8x32xf32>
    %cst_3 = arith.constant dense<0.000000e+00> : vector<8xf32>
    %16 = vector.multi_reduction <add>, %15, %cst_3 [1] : vector<8x32xf32> to vector<8xf32>
    %17 = vector.shape_cast %16 : vector<8xf32> to vector<8x1xf32>
    %18 = math.log %17 : vector<8x1xf32>
    %cst_4 = arith.constant dense<0.000000e+00> : vector<8xf32>
    %19 = vector.multi_reduction <add>, %10, %cst_4 [1] : vector<8x32xf32> to vector<8xf32>
    %20 = vector.shape_cast %19 : vector<8xf32> to vector<8x1xf32>
    %21 = tpu.iota {dimensions = array<i32: 1>} : vector<8x32xi32>
    %c0_5 = arith.constant 0 : index
    %c0_6 = arith.constant 0 : index
    %22 = vector.load %arg2[%c0_5, %c0_6] : memref<8x1xi32, #tpu.memory_space<vmem>>, vector<8x1xi32>
    %23 = vector.broadcast %22 : vector<8x1xi32> to vector<8x32xi32>
    %24 = arith.cmpi eq, %21, %23 : vector<8x32xi32>
    %cst_7 = arith.constant 0.000000e+00 : f32
    %25 = vector.broadcast %cst_7 : f32 to vector<8x32xf32>
    %26 = arith.select %24, %10, %25 : vector<8x32xi1>, vector<8x32xf32>
    %cst_8 = arith.constant dense<0.000000e+00> : vector<8xf32>
    %27 = vector.multi_reduction <add>, %26, %cst_8 [1] : vector<8x32xf32> to vector<8xf32>
    %28 = vector.shape_cast %27 : vector<8xf32> to vector<8x1xf32>
    %29 = arith.addf %12, %18 : vector<8x1xf32>
    %30 = arith.subf %28, %29 : vector<8x1xf32>
    %cst_9 = arith.constant 0.899999976 : f32
    %31 = vector.broadcast %cst_9 : f32 to vector<8x1xf32>
    %32 = arith.mulf %31, %30 : vector<8x1xf32>
    %cst_10 = arith.constant 3.200000e+01 : f32
    %33 = vector.broadcast %cst_10 : f32 to vector<8x1xf32>
    %34 = arith.mulf %33, %29 : vector<8x1xf32>
    %35 = arith.subf %20, %34 : vector<8x1xf32>
    %cst_11 = arith.constant 3.125000e-03 : f32
    %36 = vector.broadcast %cst_11 : f32 to vector<8x1xf32>
    %37 = arith.mulf %36, %35 : vector<8x1xf32>
    %38 = arith.addf %32, %37 : vector<8x1xf32>
    %cst_12 = arith.constant 0.000000e+00 : f32
    %39 = vector.broadcast %cst_12 : f32 to vector<8x1xf32>
    %40 = arith.subf %39, %38 : vector<8x1xf32>
    %cst_13 = arith.constant 0.000000e+00 : f32
    %41 = vector.broadcast %cst_13 : f32 to vector<8x1xf32>
    %42 = arith.select %6, %40, %41 : vector<8x1xi1>, vector<8x1xf32>
    %43 = vector.shape_cast %42 : vector<8x1xf32> to vector<1x8x1xf32>
    %cst_14 = arith.constant dense<0.000000e+00> : vector<1xf32>
    %44 = vector.multi_reduction <add>, %43, %cst_14 [1, 2] : vector<1x8x1xf32> to vector<1xf32>
    %45 = vector.shape_cast %44 : vector<1xf32> to vector<1x1x1xf32>
    %46 = vector.extract %45[0, 0, 0] : f32 from vector<1x1x1xf32>
    %c0_15 = arith.constant 0 : index
    %c0_16 = arith.constant 0 : index
    %47 = memref.load %arg3[%c0_15, %c0_16] : memref<1x1xf32, #tpu.memory_space<smem>>
    memref.store %46, %arg3[%c0_15, %c0_16] : memref<1x1xf32, #tpu.memory_space<smem>>
    return
  }
  func.func @transform_0(%arg0: i32) -> (i32, i32) {
    %c0_i32 = arith.constant 0 : i32
    %c0_i32_0 = arith.constant 0 : i32
    return %arg0, %c0_i32 : i32, i32
  }
  func.func @transform_1(%arg0: i32) -> (i32, i32) {
    %c0_i32 = arith.constant 0 : i32
    %c0_i32_0 = arith.constant 0 : i32
    return %arg0, %c0_i32 : i32, i32
  }
  func.func @transform_2(%arg0: i32) -> (i32, i32) {
    %c0_i32 = arith.constant 0 : i32
    %c0_i32_0 = arith.constant 0 : i32
    return %arg0, %c0_i32 : i32, i32
  }
}

</mosaic_0001>

<llo_original>
// kernel: tpu_custom_call.1
$region0: #{tpu_custom_call.1}
  #allocation0 [shape = 'u32[]', space=smem, size = 0x4, offset = 0x4, fixed_abs, tag = 'smem constant byte address 0x4 - core index']
  #allocation1 [shape = 'u32[144,128]{1,0:T(1,128)}', space=vmem, size = 0x12000, scoped, tag = 'internal scratch']
  %s0 = inlined_call_operand.vmem [shape: f32[8,32], index: 0, kind: input, shape index: {}]
  %s1 = inlined_call_operand.vmem [shape: s32[8,1], index: 1, kind: input, shape index: {}]
  %s2 = inlined_call_operand.hbm [shape: f32[1,1], index: 2, kind: output, shape index: {}]
  %s3 = sld [smem:[#allocation0]]
  $region18: #{tpu_custom_call.1} parent=0
    _
  %s5 = ssub.s32 1, %s3
  %s6 = scalar_select 0, %s5, %s3
  $region1: #{tpu_custom_call.1} parent=0
    #allocation2 [shape = 'u8[512]{0}', space=smem, size = 0x200, scoped, tag = 'output window, operand 0, single buffered']
    #allocation3 [shape = 's32[1]{0}', space=sflag, size = 0x4, scoped, tag = 'scoped memory for tpu_custom_call.1']
    %7 = vsyncpa [#allocation3], 0
    // Predicated region
    $region2: #{tpu_custom_call.1} parent=1 // pred_check
      _
    $region3: #{tpu_custom_call.1} parent=1 // pred_check_branch
      %9 = sbr.rel (0) target = $region5
    $region4: #{tpu_custom_call.1} parent=1 // pred_region
      _
    $region5: #{tpu_custom_call.1} parent=1 // pred_fallthru
      _
    // Predicated region
    $region6: #{tpu_custom_call.1} parent=1 // pred_check
      _
    $region7: #{tpu_custom_call.1} parent=1 // pred_check_branch
      %11 = sbr.rel (0) target = $region9
    $region8: #{tpu_custom_call.1} parent=1 // pred_region
      _
    $region9: #{tpu_custom_call.1} parent=1 // pred_fallthru
      _
    %v12 = vld [vmem:[%s0] sm:$0xff]
    %v13 = vlaneseq
    %v14 = vshrl.u32 %v13, 7
    %s15 = smul.u32 0, 8
    %v16 = vstv %s15
    %v17 = vadd.s32 %v14, %v16
    %vm18 = vcmp.lt.s32.totalorder %v17, 8
    %v19 = vsel %vm18, 1, 0
    %vm20 = vcmp.eq.s32.totalorder %v19, 1
    %v21 = vsel %vm20, %v12, 0.0
    %vm22 = vcmask 261120
    %v23 = vsel %vm22, %v21, -inf
    %24 = vmax.xlane.f32.xlu0 %v23
    %v25 = vpop.xlane.xlu0 %24
    %v26 = vsub.f32 %v21, %v25
    %v27 = vmul.f32 %v26, 1.442695
    %v28 = vpow.pop %v27
    %v29 = vsel %vm22, %v28, 0.0
    %30 = vadd.xlane.f32.xlu0 %v29
    %v31 = vpop.xlane.xlu0 %30
    %v32 = vlog2.pop %v31
    %v33 = vmul.f32 %v32, 0.6931472
    %v34 = vsel %vm22, %v21, 0.0
    %35 = vadd.xlane.f32.xlu0 %v34
    %v36 = vpop.xlane.xlu0 %35
    %v37 = vlaneseq
    %v38 = vand.u32 %v37, 127
    %v39 = vld [vmem:[%s1] sm:$0xff]
    %40 = vset.pattern.permute.xlu0 0
    %41 = vperm.xlu0 %40, %v39
    %v42 = vpop.permute.xlu0 %41
    %vm43 = vcmp.eq.s32.totalorder %v38, %v42
    %v44 = vsel %vm43, %v21, 0.0
    %v45 = vsel %vm22, %v44, 0.0
    %46 = vadd.xlane.f32.xlu0 %v45
    %v47 = vpop.xlane.xlu0 %46
    %v48 = vadd.f32 %v25, %v33
    %v49 = vsub.f32 %v47, %v48
    %v50 = vmul.f32 %v49, 0.9
    %v51 = vmul.f32 %v48, 32.0
    %v52 = vsub.f32 %v36, %v51
    %v53 = vmul.f32 %v52, 0.003125
    %v54 = vadd.f32 %v50, %v53
    %v55 = vsub.f32 0.0, %v54
    %v56 = vsel %vm18, %v55, 0.0
    %vm57 = vcmask 7168
    %v58 = vsel %vm57, %v56, 0.0
    %59 = vadd.xlane.f32.xlu0 %v58
    %v60 = vpop.xlane.xlu0 %59
    %v61 = vrot.slane %v60, 4
    %v62 = vadd.f32 %v60, %v61
    %v63 = vrot.slane %v62, 2
    %v64 = vadd.f32 %v62, %v63
    %v65 = vrot.slane %v64, 1
    %v66 = vadd.f32 %v64, %v65
    %s67 = vtos %v66
    %s68 = scalar_lea.smem [#allocation2], 0
    %69 = sst [smem:[%s68]] %s67
    // Predicated region
    $region10: #{tpu_custom_call.1} parent=1 // pred_check
      _
    $region11: #{tpu_custom_call.1} parent=1 // pred_check_branch
      %71 = sbr.rel (0) target = $region13
    $region12: #{tpu_custom_call.1} parent=1 // pred_region
      %s73 = ssub.s32 16, 16
      %74 = vsyncadd [#allocation3], %s73
      %77 = dma.smem_to_hbm [#allocation2], 16, %s2, [#allocation3]
    $region13: #{tpu_custom_call.1} parent=1 // pred_fallthru
      _
    // Predicated region
    $region14: #{tpu_custom_call.1} parent=1 // pred_check
      _
    $region15: #{tpu_custom_call.1} parent=1 // pred_check_branch
      %79 = sbr.rel (0) target = $region17
    $region16: #{tpu_custom_call.1} parent=1 // pred_region
      %80 = dma.done [#allocation3], 16
    $region17: #{tpu_custom_call.1} parent=1 // pred_fallthru
      _
    %81 = sfence
    %82 = vsyncpa [#allocation3], 1

</llo_original>
